<compile_context>
chip_gen: v7x
topology: tpu7x:2x2x1
jax: 0.10.0
libtpu: 0.0.40
codegen_flags: <defaults>
</compile_context>

<pallas_src>
import functools

import jax
import jax.numpy as jnp
from jax import lax
from jax.experimental import pallas as pl
from jax.experimental.pallas import tpu as pltpu

_LANE = 128
_BLOCK_BYTES = 4 << 20      # ~4 MiB per operand block (amortizes per-grid-step overhead)
_CHUNK_ROWS = 256           # in-kernel streaming chunk; multiple of 32 (any dtype packing)
_VMEM_LIMIT = 32 << 20      # 2 inputs x 2 buffers x 4 MiB = 16 MiB, plus headroom
_UNIT = 8 * _LANE           # main slab granularity: rows always a multiple of 8


def _round_up(a, b):
    return ((a + b - 1) // b) * b


def _num_tensorcores():
    # v7x packs 2 TensorCores per chip; v5e/v6e have 1.  Detection failure simply
    # falls back to the (correct) single-core path.
    try:
        kind = jax.devices()[0].device_kind.lower()
    except Exception:
        return 1
    return 2 if ("v7" in kind or "7x" in kind) else 1


def _mse_partial_kernel(x_ref, y_ref, o_ref, *, rows_valid, tile_rows, chunk_rows,
                        inner_steps, row_blocks, has_partial_last, has_overflow):
    c = pl.program_id(0)           # core split (v7x: one per TensorCore)
    i = pl.program_id(1)           # streaming / reduction axis
    g = c * inner_steps + i        # intended (un-clamped) global block index

    @pl.when(i == 0)
    def _():
        o_ref[...] = jnp.zeros_like(o_ref)

    n_chunks = tile_rows // chunk_rows

    def block_partial(masked):
        # Stream the block through small row-chunks; the carry is one (8,128) f32
        # vreg-shaped accumulator, so no large f32 temporary is ever materialized.
        def body(k, acc):
            r0 = pl.multiple_of(k * chunk_rows, chunk_rows)
            x = x_ref[pl.ds(r0, chunk_rows), :].astype(jnp.float32)
            y = y_ref[pl.ds(r0, chunk_rows), :].astype(jnp.float32)
            d = x - y
            sq = d * d
            if masked:
                # Row-level bound only (every row of the main slab is lane-complete).
                # Row indices fit int32 for any physically possible tensor size.
                row = lax.broadcasted_iota(jnp.int32, (chunk_rows, _LANE), 0)
                grow = g * tile_rows + r0 + row
                sq = jnp.where(grow < rows_valid, sq, 0.0)   # select (NaN-safe), not multiply
            return acc + jnp.sum(sq.reshape(chunk_rows // 8, 8, _LANE), axis=0)

        return lax.fori_loop(0, n_chunks, body, jnp.zeros((8, _LANE), jnp.float32))

    if not (has_partial_last or has_overflow):
        # Hot path for exactly-covered inputs: no masks, no predicates.
        o_ref[...] += block_partial(masked=False)[None]
    else:
        full_bound = row_blocks - 1 if has_partial_last else row_blocks

        @pl.when(g < full_bound)
        def _():
            o_ref[...] += block_partial(masked=False)[None]

        if has_partial_last:
            @pl.when(g == row_blocks - 1)
            def _():
                o_ref[...] += block_partial(masked=True)[None]
        # Overflow steps (g >= row_blocks; only possible for an odd block count on
        # the dual-core split) contribute nothing.


def feature_reconstruction_loss(enc_feats, dec_feats):
    """MSE(enc_feats, dec_feats) reduced ('mean') over all elements -> scalar f32."""
    assert enc_feats.shape == dec_feats.shape, "inputs must have identical shapes"
    if dec_feats.dtype != enc_feats.dtype:
        dec_feats = dec_feats.astype(enc_feats.dtype)

    n = int(enc_feats.size)
    itemsize = jnp.dtype(enc_feats.dtype).itemsize

    xf = enc_feats.reshape(-1)
    yf = dec_feats.reshape(-1)

    main_n = (n // _UNIT) * _UNIT
    # Tiny ragged remainder (< 1024 elements) reduced directly in XLA — replaces the
    # old O(n) jnp.pad round-trip through HBM.
    if main_n < n:
        tail = jnp.sum((xf[main_n:].astype(jnp.float32)
                        - yf[main_n:].astype(jnp.float32)) ** 2)
    else:
        tail = jnp.zeros((), jnp.float32)

    if main_n == 0:
        return tail / jnp.float32(n)

    # TODO(synk): when n is not a multiple of 1024 the prefix slice below may still
    # materialize a copy in XLA; a fully zero-copy ragged path would need manual DMA.
    x_main = xf if main_n == n else xf[:main_n]
    y_main = yf if main_n == n else yf[:main_n]

    rows = main_n // _LANE                       # multiple of 8
    x2 = x_main.reshape(rows, _LANE)
    y2 = y_main.reshape(rows, _LANE)

    tile_rows_max = _BLOCK_BYTES // (_LANE * itemsize)   # multiple of _CHUNK_ROWS
    if rows <= _CHUNK_ROWS:
        tile_rows = rows                          # single exact block, no masking
    else:
        tile_rows = min(tile_rows_max, _round_up(rows, _CHUNK_ROWS))
    chunk_rows = min(_CHUNK_ROWS, tile_rows)      # always divides tile_rows

    row_blocks = pl.cdiv(rows, tile_rows)
    num_splits = 2 if (_num_tensorcores() >= 2 and row_blocks >= 2) else 1
    inner_steps = pl.cdiv(row_blocks, num_splits)
    has_overflow = num_splits * inner_steps > row_blocks
    has_partial_last = (rows % tile_rows) != 0

    if has_overflow:
        def in_map(c, i):
            # Clamp so the (single) overflow step never DMAs fully out of bounds;
            # its contribution is skipped in-kernel.
            return (jnp.minimum(c * inner_steps + i, row_blocks - 1), 0)
    else:
        def in_map(c, i):
            return (c * inner_steps + i, 0)

    if num_splits == 2:
        core_sem = getattr(pltpu, "CORE_PARALLEL", "parallel")
        dim_sem = (core_sem, "arbitrary")
    else:
        dim_sem = ("arbitrary", "arbitrary")

    kernel = functools.partial(
        _mse_partial_kernel,
        rows_valid=rows, tile_rows=tile_rows, chunk_rows=chunk_rows,
        inner_steps=inner_steps, row_blocks=row_blocks,
        has_partial_last=has_partial_last, has_overflow=has_overflow)

    partials = pl.pallas_call(
        kernel,
        out_shape=jax.ShapeDtypeStruct((num_splits, 8, _LANE), jnp.float32),
        grid_spec=pltpu.PrefetchScalarGridSpec(
            num_scalar_prefetch=0,
            grid=(num_splits, inner_steps),
            in_specs=[
                pl.BlockSpec((tile_rows, _LANE), in_map),
                pl.BlockSpec((tile_rows, _LANE), in_map),
            ],
            out_specs=pl.BlockSpec((1, 8, _LANE), lambda c, i: (c, 0, 0)),
        ),
        compiler_params=pltpu.CompilerParams(
            dimension_semantics=dim_sem,
            vmem_limit_bytes=_VMEM_LIMIT,
        ),
        cost_estimate=pl.CostEstimate(
            flops=3 * n,
            transcendentals=0,
            bytes_accessed=2 * n * itemsize + num_splits * 8 * _LANE * 4,
        ),
    )(x2, y2)

    # Single cross-lane/sublane reduce + mean over the true element count.
    return (jnp.sum(partials) + tail) / jnp.float32(n)


if __name__ == "__main__":
    key = jax.random.PRNGKey(0)
    k_enc, k_dec = jax.random.split(key)

    # Small NCHW-style feature maps: batch=2, channels=4, spatial=16x16.
    enc_feats = jax.random.normal(k_enc, (2, 4, 16, 16), dtype=jnp.float32)
    dec_feats = jax.random.normal(k_dec, (2, 4, 16, 16), dtype=jnp.float32)

    loss = feature_reconstruction_loss(enc_feats, dec_feats)
    jax.block_until_ready(loss)

    # Sanity check vs plain-JAX reference (mirrors torch nn.MSELoss default 'mean').
    ref = jnp.mean((enc_feats - dec_feats) ** 2)
    assert jnp.allclose(loss, ref, rtol=1e-5, atol=1e-6), (loss, ref)

    print("KERNEL_OK")
</pallas_src>

<mosaic_0001>
module attributes {stable_mosaic.version = 11 : i64} {
  func.func @_mse_partial_kernel(%arg0: i32, %arg1: i32, %arg2: memref<16x128xf32, #tpu.memory_space<vmem>>, %arg3: memref<16x128xf32, #tpu.memory_space<vmem>>, %arg4: memref<1x8x128xf32, #tpu.memory_space<vmem>>) attributes {dimension_semantics = [#tpu.dimension_semantics<arbitrary>, #tpu.dimension_semantics<arbitrary>], iteration_bounds = array<i64: 1, 1>, scalar_prefetch = 0 : i64, scratch_operands = 0 : i64, tpu.core_type = #tpu.core_type<tc>, window_params = [{transform_indices = @transform_0, window_bounds = array<i64: 16, 128>}, {transform_indices = @transform_1, window_bounds = array<i64: 16, 128>}, {transform_indices = @transform_2, window_bounds = array<i64: 1, 8, 128>}]} {
    %c0_i32 = arith.constant 0 : i32
    %0 = arith.cmpi eq, %arg1, %c0_i32 : i32
    %1 = arith.extui %0 : i1 to i32
    %c0_i32_0 = arith.constant 0 : i32
    %2 = arith.cmpi ne, %1, %c0_i32_0 : i32
    scf.if %2 {
      %cst_10 = arith.constant 0.000000e+00 : f32
      %19 = vector.broadcast %cst_10 : f32 to vector<1x8x128xf32>
      %c0_11 = arith.constant 0 : index
      %c0_12 = arith.constant 0 : index
      %c0_13 = arith.constant 0 : index
      %20 = vector.load %arg4[%c0_11, %c0_12, %c0_13] : memref<1x8x128xf32, #tpu.memory_space<vmem>>, vector<1x8x128xf32>
      tpu.vector_store %arg4[%c0_11, %c0_12, %c0_13], %19 {strides = array<i32>} : memref<1x8x128xf32, #tpu.memory_space<vmem>>, vector<1x8x128xf32>,
    } else {
    }
    %c0 = arith.constant 0 : index
    %c0_1 = arith.constant 0 : index
    %c0_2 = arith.constant 0 : index
    %3 = vector.load %arg4[%c0, %c0_1, %c0_2] : memref<1x8x128xf32, #tpu.memory_space<vmem>>, vector<1x8x128xf32>
    %cst = arith.constant 0.000000e+00 : f32
    %4 = vector.broadcast %cst : f32 to vector<8x128xf32>
    %c0_i32_3 = arith.constant 0 : i32
    %c16_i32 = arith.constant 16 : i32
    %5 = arith.muli %c0_i32_3, %c16_i32 : i32
    %6 = tpu.assume_multiple %5, 16 : i32
    %7 = arith.index_cast %6 : i32 to index
    %c0_4 = arith.constant 0 : index
    %8 = vector.load %arg2[%7, %c0_4] : memref<16x128xf32, #tpu.memory_space<vmem>>, vector<16x128xf32>
    %9 = arith.index_cast %6 : i32 to index
    %c0_5 = arith.constant 0 : index
    %10 = vector.load %arg3[%9, %c0_5] : memref<16x128xf32, #tpu.memory_space<vmem>>, vector<16x128xf32>
    %11 = arith.subf %8, %10 : vector<16x128xf32>
    %12 = arith.mulf %11, %11 : vector<16x128xf32>
    %13 = vector.shape_cast %12 : vector<16x128xf32> to vector<2x8x128xf32>
    %cst_6 = arith.constant dense<0.000000e+00> : vector<8x128xf32>
    %14 = vector.multi_reduction <add>, %13, %cst_6 [0] : vector<2x8x128xf32> to vector<8x128xf32>
    %15 = arith.addf %4, %14 : vector<8x128xf32>
    %c1_i32 = arith.constant 1 : i32
    %16 = vector.shape_cast %15 : vector<8x128xf32> to vector<1x8x128xf32>
    %17 = arith.addf %3, %16 : vector<1x8x128xf32>
    %c0_7 = arith.constant 0 : index
    %c0_8 = arith.constant 0 : index
    %c0_9 = arith.constant 0 : index
    %18 = vector.load %arg4[%c0_7, %c0_8, %c0_9] : memref<1x8x128xf32, #tpu.memory_space<vmem>>, vector<1x8x128xf32>
    tpu.vector_store %arg4[%c0_7, %c0_8, %c0_9], %17 {strides = array<i32>} : memref<1x8x128xf32, #tpu.memory_space<vmem>>, vector<1x8x128xf32>,
    return
  }
  func.func @transform_0(%arg0: i32, %arg1: i32) -> (i32, i32) {
    %c1_i32 = arith.constant 1 : i32
    %0 = arith.muli %arg0, %c1_i32 : i32
    %1 = arith.addi %0, %arg1 : i32
    %c0_i32 = arith.constant 0 : i32
    %c0_i32_0 = arith.constant 0 : i32
    return %1, %c0_i32 : i32, i32
  }
  func.func @transform_1(%arg0: i32, %arg1: i32) -> (i32, i32) {
    %c1_i32 = arith.constant 1 : i32
    %0 = arith.muli %arg0, %c1_i32 : i32
    %1 = arith.addi %0, %arg1 : i32
    %c0_i32 = arith.constant 0 : i32
    %c0_i32_0 = arith.constant 0 : i32
    return %1, %c0_i32 : i32, i32
  }
  func.func @transform_2(%arg0: i32, %arg1: i32) -> (i32, i32, i32) {
    %c0_i32 = arith.constant 0 : i32
    %c0_i32_0 = arith.constant 0 : i32
    %c0_i32_1 = arith.constant 0 : i32
    return %arg0, %c0_i32, %c0_i32_0 : i32, i32, i32
  }
}

</mosaic_0001>

<llo_original>
// kernel: tpu_custom_call.1
$region0: #{tpu_custom_call.1}
  #allocation0 [shape = 'u32[]', space=smem, size = 0x4, offset = 0x4, fixed_abs, tag = 'smem constant byte address 0x4 - core index']
  #allocation1 [shape = 'u32[144,128]{1,0:T(1,128)}', space=vmem, size = 0x12000, scoped, tag = 'internal scratch']
  %s0 = inlined_call_operand.hbm [shape: f32[16,128], index: 0, kind: input, shape index: {}]
  %s1 = inlined_call_operand.hbm [shape: f32[16,128], index: 1, kind: input, shape index: {}]
  %s2 = inlined_call_operand.hbm [shape: f32[1,8,128], index: 2, kind: output, shape index: {}]
  %s3 = sld [smem:[#allocation0]]
  $region30: #{tpu_custom_call.1} parent=0
    _
  %s5 = ssub.s32 1, %s3
  %s6 = scalar_select 0, %s5, %s3
  $region1: #{tpu_custom_call.1} parent=0
    #allocation2 [shape = 'u8[8192]{0}', space=vmem, size = 0x2000, scoped, tag = 'input window, operand 0, single buffered']
    #allocation3 [shape = 's32[1]{0}', space=sflag, size = 0x4, scoped, tag = 'scoped memory for tpu_custom_call.1']
    #allocation4 [shape = 's32[1]{0}', space=sflag, size = 0x4, scoped, tag = 'scoped memory for tpu_custom_call.1']
    #allocation5 [shape = 'u8[8192]{0}', space=vmem, size = 0x2000, scoped, tag = 'input window, operand 1, single buffered']
    #allocation6 [shape = 's32[1]{0}', space=sflag, size = 0x4, scoped, tag = 'scoped memory for tpu_custom_call.1']
    #allocation7 [shape = 'u8[4096]{0}', space=vmem, size = 0x1000, scoped, tag = 'output window, operand 0, single buffered']
    %7 = vsyncpa [#allocation3], 0
    %8 = vsyncpa [#allocation6], 0
    %9 = vsyncpa [#allocation4], 0
    // Predicated region
    $region2: #{tpu_custom_call.1} parent=1 // pred_check
      _
    $region3: #{tpu_custom_call.1} parent=1 // pred_check_branch
      %11 = sbr.rel (0) target = $region5
    $region4: #{tpu_custom_call.1} parent=1 // pred_region
      %s12 = sadd.s32 0, 0
      %s13 = smul.u32 2, %s12
      %s15 = ssub.s32 256, 256
      %16 = vsyncadd [#allocation3], %s15
      %s17 = smul.addr %s13, 128
      %s18 = scalar_lea.hbm %s0, %s17
      %s19 = sshll.u32 [#allocation2], 4
      %s20 = int_to_ptr.vmem [resolvable:$true] %s19
      %25 = dma.hbm_to_vmem [thread:$0]  %s18, 256, %s20, [#allocation3], 128, 128, 8
    $region5: #{tpu_custom_call.1} parent=1 // pred_fallthru
      _
    // Predicated region
    $region6: #{tpu_custom_call.1} parent=1 // pred_check
      _
    $region7: #{tpu_custom_call.1} parent=1 // pred_check_branch
      %27 = sbr.rel (0) target = $region9
    $region8: #{tpu_custom_call.1} parent=1 // pred_region
      %s28 = sadd.s32 0, 0
      %s29 = smul.u32 2, %s28
      %s31 = ssub.s32 256, 256
      %32 = vsyncadd [#allocation6], %s31
      %s33 = smul.addr %s29, 128
      %s34 = scalar_lea.hbm %s1, %s33
      %s35 = sshll.u32 [#allocation5], 4
      %s36 = int_to_ptr.vmem [resolvable:$true] %s35
      %41 = dma.hbm_to_vmem [thread:$0]  %s34, 256, %s36, [#allocation6], 128, 128, 8
    $region9: #{tpu_custom_call.1} parent=1 // pred_fallthru
      _
    // Predicated region
    $region10: #{tpu_custom_call.1} parent=1 // pred_check
      _
    $region11: #{tpu_custom_call.1} parent=1 // pred_check_branch
      %43 = sbr.rel (0) target = $region13
    $region12: #{tpu_custom_call.1} parent=1 // pred_region
      %44 = dma.done [#allocation3], 256
    $region13: #{tpu_custom_call.1} parent=1 // pred_fallthru
      _
    // Predicated region
    $region14: #{tpu_custom_call.1} parent=1 // pred_check
      _
    $region15: #{tpu_custom_call.1} parent=1 // pred_check_branch
      %46 = sbr.rel (0) target = $region17
    $region16: #{tpu_custom_call.1} parent=1 // pred_region
      %47 = dma.done [#allocation6], 256
    $region17: #{tpu_custom_call.1} parent=1 // pred_fallthru
      _
    %s48 = sadd.s32 0, 0
    %s49 = smul.u32 2, %s48
    %s50 = sadd.s32 0, 0
    %s51 = smul.u32 2, %s50
    %p52 = scmp.eq.s32.totalorder 0, 0
    // Predicated region
    $region18: #{tpu_custom_call.1} parent=1 // pred_check
      %p53 = pneg %p52
    $region19: #{tpu_custom_call.1} parent=1 // pred_check_branch
      %55 = sbr.rel (%p53) target = $region21
    $region20: #{tpu_custom_call.1} parent=1 // pred_region
      %56 = vst [vmem:[#allocation7] sm:$0xff] 0.0
    $region21: #{tpu_custom_call.1} parent=1 // pred_fallthru
      _
    %v57 = vld [vmem:[#allocation7] sm:$0xff]
    %v58 = vld [vmem:[#allocation2] sm:$0xff]
    %v59 = vld [vmem:[#allocation2 + $0x8] sm:$0xff]
    %v60 = vld [vmem:[#allocation5] sm:$0xff]
    %v61 = vld [vmem:[#allocation5 + $0x8] sm:$0xff]
    %v62 = vsub.f32 %v58, %v60
    %v63 = vsub.f32 %v59, %v61
    %v64 = vmul.f32 %v62, %v62
    %v65 = vmul.f32 %v63, %v63
    %v66 = vadd.f32 %v64, %v65
    %v67 = vadd.f32 %v66, 0.0
    %v68 = vadd.f32 %v57, %v67
    %69 = vst [vmem:[#allocation7] sm:$0xff] %v68
    // Predicated region
    $region22: #{tpu_custom_call.1} parent=1 // pred_check
      _
    $region23: #{tpu_custom_call.1} parent=1 // pred_check_branch
      %71 = sbr.rel (0) target = $region25
    $region24: #{tpu_custom_call.1} parent=1 // pred_region
      %s73 = ssub.s32 128, 128
      %74 = vsyncadd [#allocation4], %s73
      %s76 = sshll.u32 [#allocation7], 4
      %s77 = int_to_ptr.vmem [resolvable:$true] %s76
      %79 = dma.vmem_to_hbm [thread:$0]  %s77, 128, %s2, [#allocation4]
    $region25: #{tpu_custom_call.1} parent=1 // pred_fallthru
      _
    // Predicated region
    $region26: #{tpu_custom_call.1} parent=1 // pred_check
      _
    $region27: #{tpu_custom_call.1} parent=1 // pred_check_branch
      %81 = sbr.rel (0) target = $region29
    $region28: #{tpu_custom_call.1} parent=1 // pred_region
      %82 = dma.done [#allocation4], 128
    $region29: #{tpu_custom_call.1} parent=1 // pred_fallthru
      _
    %83 = vsyncpa [#allocation3], 1
    %84 = vsyncpa [#allocation6], 1
    %85 = vsyncpa [#allocation4], 1

</llo_original>
